<compile_context>
chip_gen: v7x
topology: tpu7x:2x2x1
jax: 0.10.0
libtpu: 0.0.40
codegen_flags: <defaults>
</compile_context>

<pallas_src>
import jax
import jax.numpy as jnp
from jax.experimental import pallas as pl
from jax.experimental.pallas import tpu as pltpu

LANE = 128
SUBLANE = 8


def make_lr_kernel(in_features: int):
    def lr_kernel(w_ref, b_ref, x_ref, o_ref):
        # w_ref: SMEM (in_features,), b_ref: SMEM (1,)
        # x_ref: VMEM (in_features, R, 128)  -- dense (sublane, lane) tiles
        # o_ref: VMEM (R, 128)
        z = x_ref[0] * w_ref[0] + b_ref[0]                 # (R, 128), VPU FMAs
        for k in range(1, in_features):                    # static, in_features == 2
            z = z + x_ref[k] * w_ref[k]
        # sigmoid(z) = 0.5 * tanh(0.5 * z) + 0.5  -> tanh on the EUP slot
        o_ref[...] = (0.5 * jnp.tanh(0.5 * z) + 0.5).astype(o_ref.dtype)
    return lr_kernel


def _round_up(a: int, m: int) -> int:
    return ((a + m - 1) // m) * m


def _pick_tile_rows(rows: int, target_rows: int) -> int:
    """Rows are 128-lane groups; tile must be a multiple of 8 (dense sublanes)."""
    target_rows = max(SUBLANE, (target_rows // SUBLANE) * SUBLANE)
    rows_p = _round_up(rows, SUBLANE)
    if rows_p <= target_rows:
        tile = rows_p
        # A single big step would leave one v7x TensorCore idle: split in two.
        if tile >= 1024:  # >= 128K lanes -> per-step overhead still negligible
            tile = _round_up((tile + 1) // 2, SUBLANE)
        return tile
    return target_rows


def lr_forward(x, weight, bias, *, target_tile_lanes: int = 512 * 1024):
    """x: (N, in_f) f32, weight: (1, in_f) f32 (PyTorch layout), bias: (1,) f32 -> (N, 1).

    Default tile = 512K lanes/step => 6 MiB of HBM traffic and ~12 MiB of
    double-buffered VMEM per step: fits the default scoped-VMEM limit on
    v5e (16 MiB), v6e (32 MiB) and v7x (32 MiB) with no flag plumbing.
    """
    n, in_f = x.shape
    out_f = weight.shape[0]
    assert out_f == 1

    rows = -(-n // LANE)                                   # 128-lane rows needed
    tile_rows = _pick_tile_rows(rows, target_tile_lanes // LANE)
    n_rows_pad = _round_up(rows, tile_rows)
    n_pad = n_rows_pad * LANE

    # Lane-dense, feature-major layout: (in_f, n_rows_pad, 128).
    # NOTE: callers that can provide x already feature-major (in_f, N) and
    # consume a flat (N,) output should do so and skip this pad+transpose copy.
    xt = jnp.pad(x, ((0, n_pad - n), (0, 0))).T.reshape(in_f, n_rows_pad, LANE)

    w = weight.reshape(in_f).astype(jnp.float32)           # (in_f,) SMEM scalars
    b = bias.reshape(out_f).astype(jnp.float32)            # (1,)

    grid = (n_rows_pad // tile_rows,)

    out_pad = pl.pallas_call(
        make_lr_kernel(in_f),
        out_shape=jax.ShapeDtypeStruct((n_rows_pad, LANE), x.dtype),
        grid=grid,
        in_specs=[
            pl.BlockSpec(memory_space=pltpu.MemorySpace.SMEM),          # weight scalars
            pl.BlockSpec(memory_space=pltpu.MemorySpace.SMEM),          # bias scalar
            pl.BlockSpec((in_f, tile_rows, LANE), lambda i: (0, i, 0)),  # x tile
        ],
        out_specs=pl.BlockSpec((tile_rows, LANE), lambda i: (i, 0)),     # dense output
        compiler_params=pltpu.CompilerParams(
            dimension_semantics=("parallel",),
        ),
    )(w, b, xt)

    # Padded samples give sigmoid(b) (finite) and are sliced off here.
    return out_pad.reshape(n_pad)[:n].reshape(n, 1)


if __name__ == "__main__":
    key = jax.random.PRNGKey(0)
    kx, kw, kb = jax.random.split(key, 3)

    # Shapes implied by nn.Linear(2, 1): features_in=2, features_out=1.
    N = 8
    x = jax.random.normal(kx, (N, 2), dtype=jnp.float32)

    # Deterministic synthetic parameters (PyTorch-style uniform(-1/sqrt(2), 1/sqrt(2))).
    bound = 1.0 / jnp.sqrt(2.0)
    weight = jax.random.uniform(kw, (1, 2), minval=-bound, maxval=bound, dtype=jnp.float32)
    bias = jax.random.uniform(kb, (1,), minval=-bound, maxval=bound, dtype=jnp.float32)

    out = lr_forward(x, weight, bias)
    out = jax.block_until_ready(out)

    ref = jax.nn.sigmoid(x @ weight.T + bias)
    assert out.shape == (N, 1)
    assert jnp.allclose(out, ref, atol=1e-5, rtol=1e-5)

    # Second check: ragged batch + multi-step grid (small target tile forces >1 block).
    N2 = 2000
    x2 = jax.random.normal(kx, (N2, 2), dtype=jnp.float32)
    out2 = jax.block_until_ready(lr_forward(x2, weight, bias, target_tile_lanes=1024))
    ref2 = jax.nn.sigmoid(x2 @ weight.T + bias)
    assert out2.shape == (N2, 1)
    assert jnp.allclose(out2, ref2, atol=1e-5, rtol=1e-5)

    print("KERNEL_OK")
</pallas_src>

<mosaic_0001>
module attributes {stable_mosaic.version = 11 : i64} {
  func.func @lr_kernel(%arg0: i32, %arg1: memref<2xf32, #tpu.memory_space<smem>>, %arg2: memref<1xf32, #tpu.memory_space<smem>>, %arg3: memref<2x8x128xf32, #tpu.memory_space<vmem>>, %arg4: memref<8x128xf32, #tpu.memory_space<vmem>>) attributes {dimension_semantics = [#tpu.dimension_semantics<parallel>], iteration_bounds = array<i64: 1>, scalar_prefetch = 0 : i64, scratch_operands = 0 : i64, tpu.core_type = #tpu.core_type<tc>, window_params = [{transform_indices = @transform_0, window_bounds = array<i64: 2>}, {transform_indices = @transform_1, window_bounds = array<i64: 1>}, {transform_indices = @transform_2, window_bounds = array<i64: 2, 8, 128>}, {transform_indices = @transform_3, window_bounds = array<i64: 8, 128>}]} {
    %c0 = arith.constant 0 : index
    %c0_0 = arith.constant 0 : index
    %c0_1 = arith.constant 0 : index
    %0 = vector.load %arg3[%c0, %c0_0, %c0_1] : memref<2x8x128xf32, #tpu.memory_space<vmem>>, vector<1x8x128xf32>
    %1 = vector.shape_cast %0 : vector<1x8x128xf32> to vector<8x128xf32>
    %c0_2 = arith.constant 0 : index
    %2 = memref.load %arg1[%c0_2] : memref<2xf32, #tpu.memory_space<smem>>
    %3 = vector.broadcast %2 : f32 to vector<8x128xf32>
    %4 = arith.mulf %1, %3 : vector<8x128xf32>
    %c0_3 = arith.constant 0 : index
    %5 = memref.load %arg2[%c0_3] : memref<1xf32, #tpu.memory_space<smem>>
    %6 = vector.broadcast %5 : f32 to vector<8x128xf32>
    %7 = arith.addf %4, %6 : vector<8x128xf32>
    %c1 = arith.constant 1 : index
    %c0_4 = arith.constant 0 : index
    %c0_5 = arith.constant 0 : index
    %8 = vector.load %arg3[%c1, %c0_4, %c0_5] : memref<2x8x128xf32, #tpu.memory_space<vmem>>, vector<1x8x128xf32>
    %9 = vector.shape_cast %8 : vector<1x8x128xf32> to vector<8x128xf32>
    %c1_6 = arith.constant 1 : index
    %10 = memref.load %arg1[%c1_6] : memref<2xf32, #tpu.memory_space<smem>>
    %11 = vector.broadcast %10 : f32 to vector<8x128xf32>
    %12 = arith.mulf %9, %11 : vector<8x128xf32>
    %13 = arith.addf %7, %12 : vector<8x128xf32>
    %cst = arith.constant 5.000000e-01 : f32
    %14 = vector.broadcast %cst : f32 to vector<8x128xf32>
    %15 = arith.mulf %14, %13 : vector<8x128xf32>
    %16 = math.tanh %15 : vector<8x128xf32>
    %cst_7 = arith.constant 5.000000e-01 : f32
    %17 = vector.broadcast %cst_7 : f32 to vector<8x128xf32>
    %18 = arith.mulf %17, %16 : vector<8x128xf32>
    %cst_8 = arith.constant 5.000000e-01 : f32
    %19 = vector.broadcast %cst_8 : f32 to vector<8x128xf32>
    %20 = arith.addf %18, %19 : vector<8x128xf32>
    %c0_9 = arith.constant 0 : index
    %c0_10 = arith.constant 0 : index
    %21 = vector.load %arg4[%c0_9, %c0_10] : memref<8x128xf32, #tpu.memory_space<vmem>>, vector<8x128xf32>
    tpu.vector_store %arg4[%c0_9, %c0_10], %20 {strides = array<i32>} : memref<8x128xf32, #tpu.memory_space<vmem>>, vector<8x128xf32>,
    return
  }
  func.func @transform_0(%arg0: i32) -> i32 {
    %c0_i32 = arith.constant 0 : i32
    %c0_i32_0 = arith.constant 0 : i32
    return %c0_i32 : i32
  }
  func.func @transform_1(%arg0: i32) -> i32 {
    %c0_i32 = arith.constant 0 : i32
    %c0_i32_0 = arith.constant 0 : i32
    return %c0_i32 : i32
  }
  func.func @transform_2(%arg0: i32) -> (i32, i32, i32) {
    %c0_i32 = arith.constant 0 : i32
    %c0_i32_0 = arith.constant 0 : i32
    %c0_i32_1 = arith.constant 0 : i32
    return %c0_i32, %arg0, %c0_i32_0 : i32, i32, i32
  }
  func.func @transform_3(%arg0: i32) -> (i32, i32) {
    %c0_i32 = arith.constant 0 : i32
    %c0_i32_0 = arith.constant 0 : i32
    return %arg0, %c0_i32 : i32, i32
  }
}

</mosaic_0001>

<llo_original>
// kernel: tpu_custom_call.1
$region0: #{tpu_custom_call.1}
  #allocation0 [shape = 'u32[]', space=smem, size = 0x4, offset = 0x4, fixed_abs, tag = 'smem constant byte address 0x4 - core index']
  #allocation1 [shape = 'u32[144,128]{1,0:T(1,128)}', space=vmem, size = 0x12000, scoped, tag = 'internal scratch']
  #allocation2 [shape = 'f32[1]{0:T(128)S(6)}', space=smem, size = 0x200, scoped, tag = 'scoped memory for tpu_custom_call.1']
  %s0 = inlined_call_operand.vmem [shape: f32[2], index: 0, kind: input, shape index: {}]
  %s1 = inlined_call_operand.<no memory space> [shape: f32[1], index: 1, kind: input, shape index: {}]
  %s2 = inlined_call_operand.hbm [shape: f32[2,8,128], index: 2, kind: input, shape index: {}]
  %s3 = inlined_call_operand.hbm [shape: f32[8,128], index: 3, kind: output, shape index: {}]
  %s4 = sld [smem:[#allocation0]]
  $region30: #{tpu_custom_call.1} parent=0
    _
  %s6 = ssub.s32 1, %s4
  %s7 = scalar_select 0, %s6, %s4
  %8 = sst [smem:[#allocation2]] %s1
  $region1: #{tpu_custom_call.1} parent=0
    #allocation3 [shape = 'u8[512]{0}', space=smem, size = 0x200, scoped, tag = 'input window, operand 0, single buffered']
    #allocation4 [shape = 's32[1]{0}', space=sflag, size = 0x4, scoped, tag = 'scoped memory for tpu_custom_call.1']
    #allocation5 [shape = 's32[1]{0}', space=sflag, size = 0x4, scoped, tag = 'scoped memory for tpu_custom_call.1']
    #allocation6 [shape = 's32[1]{0}', space=sflag, size = 0x4, scoped, tag = 'scoped memory for tpu_custom_call.1']
    #allocation7 [shape = 'u8[8192]{0}', space=vmem, size = 0x2000, scoped, tag = 'input window, operand 2, single buffered']
    #allocation8 [shape = 'u8[4096]{0}', space=vmem, size = 0x1000, scoped, tag = 'output window, operand 0, single buffered']
    %9 = vsyncpa [#allocation6], 0
    %10 = vsyncpa [#allocation4], 0
    %11 = vsyncpa [#allocation5], 0
    // Predicated region
    $region2: #{tpu_custom_call.1} parent=1 // pred_check
      _
    $region3: #{tpu_custom_call.1} parent=1 // pred_check_branch
      %13 = sbr.rel (0) target = $region5
    $region4: #{tpu_custom_call.1} parent=1 // pred_region
      %s15 = ssub.s32 16, 16
      %16 = vsyncadd [#allocation6], %s15
      %s18 = sshll.u32 %s0, 4
      %s19 = int_to_ptr.vmem [resolvable:$true] %s18
      %21 = dma.vmem_to_smem %s19, 16, [#allocation3], [#allocation6]
    $region5: #{tpu_custom_call.1} parent=1 // pred_fallthru
      _
    // Predicated region
    $region6: #{tpu_custom_call.1} parent=1 // pred_check
      _
    $region7: #{tpu_custom_call.1} parent=1 // pred_check_branch
      %23 = sbr.rel (0) target = $region9
    $region8: #{tpu_custom_call.1} parent=1 // pred_region
      _
    $region9: #{tpu_custom_call.1} parent=1 // pred_fallthru
      _
    // Predicated region
    $region10: #{tpu_custom_call.1} parent=1 // pred_check
      _
    $region11: #{tpu_custom_call.1} parent=1 // pred_check_branch
      %25 = sbr.rel (0) target = $region13
    $region12: #{tpu_custom_call.1} parent=1 // pred_region
      %s27 = ssub.s32 256, 256
      %28 = vsyncadd [#allocation4], %s27
      %s29 = sshll.u32 [#allocation7], 4
      %s30 = int_to_ptr.vmem [resolvable:$true] %s29
      %35 = dma.hbm_to_vmem [thread:$0]  %s2, 256, %s30, [#allocation4], 128, 128, 8
    $region13: #{tpu_custom_call.1} parent=1 // pred_fallthru
      _
    // Predicated region
    $region14: #{tpu_custom_call.1} parent=1 // pred_check
      _
    $region15: #{tpu_custom_call.1} parent=1 // pred_check_branch
      %37 = sbr.rel (0) target = $region17
    $region16: #{tpu_custom_call.1} parent=1 // pred_region
      %38 = dma.done [#allocation6], 16
    $region17: #{tpu_custom_call.1} parent=1 // pred_fallthru
      _
    // Predicated region
    $region18: #{tpu_custom_call.1} parent=1 // pred_check
      _
    $region19: #{tpu_custom_call.1} parent=1 // pred_check_branch
      %40 = sbr.rel (0) target = $region21
    $region20: #{tpu_custom_call.1} parent=1 // pred_region
      %41 = dma.done [#allocation4], 256
    $region21: #{tpu_custom_call.1} parent=1 // pred_fallthru
      _
    %42 = sfence
    %v43 = vld [vmem:[#allocation7] sm:$0xff]
    %s44 = sld [smem:[#allocation3]]
    %v45 = vstv %s44
    %v46 = vmul.f32 %v43, %v45
    %s47 = sld [smem:[#allocation2]]
    %v48 = vstv %s47
    %v49 = vadd.f32 %v46, %v48
    %s50 = scalar_lea.vmem [#allocation7], 8
    %v51 = vld [vmem:[%s50] sm:$0xff]
    %s52 = sld [smem:[#allocation3 + $0x1]]
    %v53 = vstv %s52
    %v54 = vmul.f32 %v51, %v53
    %v55 = vadd.f32 %v49, %v54
    %v56 = vmul.f32 %v55, 0.5
    %v57 = vtanh.pop %v56
    %v58 = vmul.f32 %v57, 0.5
    %v59 = vadd.f32 %v58, 0.5
    %60 = vst [vmem:[#allocation8] sm:$0xff] %v59
    // Predicated region
    $region22: #{tpu_custom_call.1} parent=1 // pred_check
      _
    $region23: #{tpu_custom_call.1} parent=1 // pred_check_branch
      %62 = sbr.rel (0) target = $region25
    $region24: #{tpu_custom_call.1} parent=1 // pred_region
      %s64 = ssub.s32 128, 128
      %65 = vsyncadd [#allocation5], %s64
      %s67 = sshll.u32 [#allocation8], 4
      %s68 = int_to_ptr.vmem [resolvable:$true] %s67
      %70 = dma.vmem_to_hbm [thread:$0]  %s68, 128, %s3, [#allocation5]
    $region25: #{tpu_custom_call.1} parent=1 // pred_fallthru
      _
    // Predicated region
    $region26: #{tpu_custom_call.1} parent=1 // pred_check
      _
    $region27: #{tpu_custom_call.1} parent=1 // pred_check_branch
      %72 = sbr.rel (0) target = $region29
    $region28: #{tpu_custom_call.1} parent=1 // pred_region
      %73 = dma.done [#allocation5], 128
    $region29: #{tpu_custom_call.1} parent=1 // pred_fallthru
      _
    %74 = vsyncpa [#allocation4], 1
    %75 = vsyncpa [#allocation5], 1
    %76 = vsyncpa [#allocation6], 1

</llo_original>
